<compile_context>
chip_gen: v5e
topology: v5e:2x2
jax: 0.10.0
libtpu: 0.0.40
codegen_flags: <defaults>
</compile_context>

<pallas_src>
import functools
import math
from math import sqrt

import numpy as np
import jax
import jax.numpy as jnp
from jax.experimental import pallas as pl
from jax.experimental.pallas import tpu as pltpu


# ----------------------------------------------------------------------------
# Config (mirrors SSDAnchorGenerator.__init__) — plain Python / numpy.
# ----------------------------------------------------------------------------
class SSDAnchorConfig:
    def __init__(self, output_strides, aspect_ratios,
                 min_ratio=0.1, max_ratio=1.05, no_clipping=False):
        os_ar = dict(zip(output_strides, aspect_ratios))
        scales = np.linspace(min_ratio, max_ratio, len(output_strides) + 1)
        self.sizes = {}
        for i, s in enumerate(output_strides):
            self.sizes[s] = {"min": float(scales[i]),
                             "max": sqrt(float(scales[i]) * float(scales[i + 1]))}
        # Dedup via set(): identical construct to the PyTorch module, so the
        # anchor ordering matches it exactly (integer aspect ratios).
        self.output_strides_aspect_ratio = {k: list(set(v)) for k, v in os_ar.items()}
        self.clip = not no_clipping

    def num_anchors_per_os(self):
        return [2 + 2 * len(ar) for ar in self.output_strides_aspect_ratio.values()]

    def wh_table(self, output_stride):
        """Per-anchor (w, h) pairs, in the exact order PyTorch appends them."""
        mn = self.sizes[output_stride]["min"]
        mx = self.sizes[output_stride]["max"]
        wh = [(mn, mn), (mx, mx)]
        for ratio in self.output_strides_aspect_ratio[output_stride]:
            r = sqrt(ratio)
            wh.append((mn * r, mn / r))
            wh.append((mn / r, mn * r))
        return np.asarray(wh, dtype=np.float64)  # (A, 2), float64 like PyTorch math


# ----------------------------------------------------------------------------
# Host-side template construction (per level).
# ----------------------------------------------------------------------------
def _build_level_template(cfg, H, W, output_stride):
    """Lane-dense per-column template for one SSD level.

    Packs m = 128/gcd(W*C,128) whole feature-map rows per output row so the
    lane count L = m*W*C is always a multiple of 128 (no masked stores, no
    fallback path).  Template rows:
      row 0: base   = cx (full), (y_off+0.5)/H part of cy, clipped w, clipped h
      row 1: scaled = (k==1) * (m / H)   -> kernel adds row_idx * scaled
    """
    wh = cfg.wh_table(output_stride)             # (A, 2)
    if cfg.clip:
        wh = np.clip(wh, 0.0, 1.0)               # only w/h can ever clip
    A = wh.shape[0]
    C = 4 * A

    m = 128 // math.gcd(W * C, 128)              # smallest m with (m*W*C) % 128 == 0
    L = m * W * C                                # lanes per packed row (mult of 128)
    R_valid = -(-H // m)                         # ceil(H / m) packed rows

    c = np.arange(L)
    g = c // C                                   # cell index within packed row
    y_off = g // W                               # 0 .. m-1
    x = g % W
    k = c % 4
    a = (c % C) // 4
    base = np.zeros(L, dtype=np.float64)
    base[k == 0] = (x[k == 0] + 0.5) / W                 # full cx (column-only)
    base[k == 1] = (y_off[k == 1] + 0.5) / H             # cy column part
    base[k == 2] = wh[a[k == 2], 0]
    base[k == 3] = wh[a[k == 3], 1]
    scaled_cy_mask = (k == 1).astype(np.float64) * (float(m) / float(H))
    tmpl = np.stack([base, scaled_cy_mask]).astype(np.float32)     # (2, L)

    return {"tmpl": tmpl, "m": m, "R": R_valid, "L": L, "A": A,
            "H": H, "W": W, "os": output_stride}


# ----------------------------------------------------------------------------
# Pallas kernel: one grid step writes the whole fused (N, R_max, L_max) slab.
# ----------------------------------------------------------------------------
def _anchor_kernel(tmpl_ref, out_ref, *, num_levels):
    n_rows = out_ref.shape[1]                                     # R_max
    rows = jax.lax.broadcasted_iota(jnp.int32, (n_rows, 1), 0).astype(jnp.float32)
    # num_levels is tiny (SSD has a handful of heads) -> static unroll; each
    # level is a single broadcast mul+add over a lane-dense (R_max, L_max) tile.
    for l in range(num_levels):
        t = tmpl_ref[l]                                           # (2, L_max)
        out_ref[l] = t[0:1, :] + rows * t[1:2, :]


def generate_anchors_fused(cfg: SSDAnchorConfig, levels):
    """One pallas_call for a list of (H, W, output_stride) levels.

    Returns a list of (H*W*A, 4) float32 arrays, one per level, matching
    SSDAnchorGenerator.generate_anchors_center_form exactly (up to f32 ULPs).
    """
    metas = [_build_level_template(cfg, H, W, s) for (H, W, s) in levels]
    N = len(metas)
    L_max = max(mt["L"] for mt in metas)                 # already a multiple of 128
    R_max = max(mt["R"] for mt in metas)
    R_max = ((R_max + 7) // 8) * 8                       # sublane-aligned stores

    tmpl_all = np.zeros((N, 2, L_max), dtype=np.float32)
    for l, mt in enumerate(metas):
        tmpl_all[l, :, :mt["L"]] = mt["tmpl"]            # zero lane padding

    kernel = functools.partial(_anchor_kernel, num_levels=N)

    out_bytes = 4 * N * R_max * L_max
    tmpl_bytes = 4 * N * 2 * L_max

    out = pl.pallas_call(
        kernel,
        out_shape=jax.ShapeDtypeStruct((N, R_max, L_max), jnp.float32),
        grid=(1,),                                       # single step: all overhead amortized
        in_specs=[pl.BlockSpec((N, 2, L_max), lambda i: (0, 0, 0))],
        out_specs=pl.BlockSpec((N, R_max, L_max), lambda i: (0, 0, 0)),
        compiler_params=pltpu.CompilerParams(
            dimension_semantics=("arbitrary",)),
        cost_estimate=pl.CostEstimate(
            flops=2 * N * R_max * L_max,
            transcendentals=0,
            bytes_accessed=out_bytes + tmpl_bytes),
    )(jnp.asarray(tmpl_all))

    # Free layout plumbing: each level's valid (R, L) slice reshapes row-major
    # into the PyTorch per-cell / per-anchor append order; slice off the
    # packed-row tail padding.
    results = []
    for l, mt in enumerate(metas):
        n_valid = mt["H"] * mt["W"] * mt["A"]
        lvl = out[l, :mt["R"], :mt["L"]].reshape(-1, 4)[:n_valid]
        results.append(lvl)
    return results


# ----------------------------------------------------------------------------
# Module wrapper (mirrors SSDAnchorGenerator.forward / get_anchors caching).
# ----------------------------------------------------------------------------
class SSDAnchorGeneratorPallas:
    def __init__(self, output_strides, aspect_ratios, min_ratio=0.1,
                 max_ratio=1.05, no_clipping=False):
        self.cfg = SSDAnchorConfig(output_strides, aspect_ratios,
                                   min_ratio, max_ratio, no_clipping)
        self.anchors_dict = {}

    def num_anchors_per_os(self):
        return self.cfg.num_anchors_per_os()

    @staticmethod
    def _key(h, w, s):
        return "h_{}_w_{}_os_{}".format(h, w, s)

    def precompute(self, levels):
        """Fuse all not-yet-cached SSD levels into a single pallas_call."""
        missing = [lvl for lvl in dict.fromkeys(levels)
                   if self._key(*lvl) not in self.anchors_dict]
        if not missing:
            return
        results = generate_anchors_fused(self.cfg, missing)
        for lvl, anchors in zip(missing, results):
            self.anchors_dict[self._key(*lvl)] = anchors

    def __call__(self, fm_height: int, fm_width: int, fm_output_stride: int):
        key = self._key(fm_height, fm_width, fm_output_stride)
        if key not in self.anchors_dict:
            # Cache miss -> single-level call through the same fused path
            # (still one dispatch, one grid step, one lane-dense block).
            self.anchors_dict[key] = generate_anchors_fused(
                self.cfg, [(fm_height, fm_width, fm_output_stride)])[0]
        return self.anchors_dict[key]


# ----------------------------------------------------------------------------
# Pure-numpy reference (identical semantics to the PyTorch module).
# ----------------------------------------------------------------------------
def generate_anchors_ref(cfg: SSDAnchorConfig, height, width, output_stride):
    mn = cfg.sizes[output_stride]["min"]
    mx = cfg.sizes[output_stride]["max"]
    ars = cfg.output_strides_aspect_ratio[output_stride]
    rows = []
    sx, sy = 1.0 / width, 1.0 / height
    for y in range(height):
        for x in range(width):
            cx = (x + 0.5) * sx
            cy = (y + 0.5) * sy
            rows.append([cx, cy, mn, mn])
            rows.append([cx, cy, mx, mx])
            for ratio in ars:
                r = sqrt(ratio)
                rows.append([cx, cy, mn * r, mn / r])
                rows.append([cx, cy, mn / r, mn * r])
    out = np.asarray(rows, dtype=np.float32)
    if cfg.clip:
        out = np.clip(out, 0.0, 1.0)
    return out


if __name__ == "__main__":
    # The module's forward consumes only integer shape parameters; no tensor
    # input exists.  PRNGKey(0) is created to satisfy determinism conventions.
    _ = jax.random.PRNGKey(0)

    output_strides = [16, 32, 64]
    aspect_ratios = [[2, 3], [2, 3], [2]]
    gen = SSDAnchorGeneratorPallas(output_strides, aspect_ratios)

    # All SSD heads fused into ONE pallas_call (one grid step total).
    # Includes a non-divisible 3x3 head, which is now lane-dense via packing
    # + row padding (no masked-store fallback).
    levels = [(16, 16, 16), (8, 8, 32), (4, 4, 64), (3, 3, 64)]
    gen.precompute(levels)

    for (h, w, s) in levels:
        got = jax.block_until_ready(gen(h, w, s))
        ref = generate_anchors_ref(gen.cfg, h, w, s)
        assert got.shape == ref.shape, (got.shape, ref.shape)
        np.testing.assert_allclose(np.asarray(got), ref, rtol=1e-6, atol=1e-6)

    # On-demand cache-miss path (single-level fused call), H % pack_m != 0.
    got = jax.block_until_ready(gen(6, 6, 32))
    np.testing.assert_allclose(np.asarray(got),
                               generate_anchors_ref(gen.cfg, 6, 6, 32),
                               rtol=1e-6, atol=1e-6)

    print("KERNEL_OK")
</pallas_src>

<mosaic_0001>
module attributes {stable_mosaic.version = 11 : i64} {
  func.func @_anchor_kernel(%arg0: i32, %arg1: memref<4x2x384xf32, #tpu.memory_space<vmem>>, %arg2: memref<4x16x384xf32, #tpu.memory_space<vmem>>) attributes {dimension_semantics = [#tpu.dimension_semantics<arbitrary>], iteration_bounds = array<i64: 1>, scalar_prefetch = 0 : i64, scratch_operands = 0 : i64, tpu.core_type = #tpu.core_type<tc>, window_params = [{pipeline_mode = #tpu.pipeline_mode<synchronous>, transform_indices = @transform_0, window_bounds = array<i64: 4, 2, 384>}, {pipeline_mode = #tpu.pipeline_mode<synchronous>, transform_indices = @transform_1, window_bounds = array<i64: 4, 16, 384>}]} {
    %0 = tpu.iota {dimensions = array<i32: 0>} : vector<16x1xi32>
    %1 = arith.sitofp %0 : vector<16x1xi32> to vector<16x1xf32>
    %c0 = arith.constant 0 : index
    %c0_0 = arith.constant 0 : index
    %c0_1 = arith.constant 0 : index
    %2 = vector.load %arg1[%c0, %c0_0, %c0_1] : memref<4x2x384xf32, #tpu.memory_space<vmem>>, vector<1x2x384xf32>
    %3 = vector.shape_cast %2 : vector<1x2x384xf32> to vector<2x384xf32>
    %4 = vector.extract_strided_slice %3 {offsets = [0, 0], sizes = [1, 384], strides = [1, 1]} : vector<2x384xf32> to vector<1x384xf32>
    %5 = vector.extract_strided_slice %3 {offsets = [1, 0], sizes = [1, 384], strides = [1, 1]} : vector<2x384xf32> to vector<1x384xf32>
    %6 = vector.broadcast %1 : vector<16x1xf32> to vector<16x384xf32>
    %7 = vector.broadcast %5 : vector<1x384xf32> to vector<16x384xf32>
    %8 = arith.mulf %6, %7 : vector<16x384xf32>
    %9 = vector.broadcast %4 : vector<1x384xf32> to vector<16x384xf32>
    %10 = arith.addf %9, %8 : vector<16x384xf32>
    %c0_2 = arith.constant 0 : index
    %c0_3 = arith.constant 0 : index
    %c0_4 = arith.constant 0 : index
    %11 = vector.load %arg2[%c0_2, %c0_3, %c0_4] : memref<4x16x384xf32, #tpu.memory_space<vmem>>, vector<1x16x384xf32>
    %12 = vector.shape_cast %11 : vector<1x16x384xf32> to vector<16x384xf32>
    %13 = vector.shape_cast %10 : vector<16x384xf32> to vector<1x16x384xf32>
    tpu.vector_store %arg2[%c0_2, %c0_3, %c0_4], %13 {strides = array<i32>} : memref<4x16x384xf32, #tpu.memory_space<vmem>>, vector<1x16x384xf32>,
    %c1 = arith.constant 1 : index
    %c0_5 = arith.constant 0 : index
    %c0_6 = arith.constant 0 : index
    %14 = vector.load %arg1[%c1, %c0_5, %c0_6] : memref<4x2x384xf32, #tpu.memory_space<vmem>>, vector<1x2x384xf32>
    %15 = vector.shape_cast %14 : vector<1x2x384xf32> to vector<2x384xf32>
    %16 = vector.extract_strided_slice %15 {offsets = [0, 0], sizes = [1, 384], strides = [1, 1]} : vector<2x384xf32> to vector<1x384xf32>
    %17 = vector.extract_strided_slice %15 {offsets = [1, 0], sizes = [1, 384], strides = [1, 1]} : vector<2x384xf32> to vector<1x384xf32>
    %18 = vector.broadcast %1 : vector<16x1xf32> to vector<16x384xf32>
    %19 = vector.broadcast %17 : vector<1x384xf32> to vector<16x384xf32>
    %20 = arith.mulf %18, %19 : vector<16x384xf32>
    %21 = vector.broadcast %16 : vector<1x384xf32> to vector<16x384xf32>
    %22 = arith.addf %21, %20 : vector<16x384xf32>
    %c1_7 = arith.constant 1 : index
    %c0_8 = arith.constant 0 : index
    %c0_9 = arith.constant 0 : index
    %23 = vector.load %arg2[%c1_7, %c0_8, %c0_9] : memref<4x16x384xf32, #tpu.memory_space<vmem>>, vector<1x16x384xf32>
    %24 = vector.shape_cast %23 : vector<1x16x384xf32> to vector<16x384xf32>
    %25 = vector.shape_cast %22 : vector<16x384xf32> to vector<1x16x384xf32>
    tpu.vector_store %arg2[%c1_7, %c0_8, %c0_9], %25 {strides = array<i32>} : memref<4x16x384xf32, #tpu.memory_space<vmem>>, vector<1x16x384xf32>,
    %c2 = arith.constant 2 : index
    %c0_10 = arith.constant 0 : index
    %c0_11 = arith.constant 0 : index
    %26 = vector.load %arg1[%c2, %c0_10, %c0_11] : memref<4x2x384xf32, #tpu.memory_space<vmem>>, vector<1x2x384xf32>
    %27 = vector.shape_cast %26 : vector<1x2x384xf32> to vector<2x384xf32>
    %28 = vector.extract_strided_slice %27 {offsets = [0, 0], sizes = [1, 384], strides = [1, 1]} : vector<2x384xf32> to vector<1x384xf32>
    %29 = vector.extract_strided_slice %27 {offsets = [1, 0], sizes = [1, 384], strides = [1, 1]} : vector<2x384xf32> to vector<1x384xf32>
    %30 = vector.broadcast %1 : vector<16x1xf32> to vector<16x384xf32>
    %31 = vector.broadcast %29 : vector<1x384xf32> to vector<16x384xf32>
    %32 = arith.mulf %30, %31 : vector<16x384xf32>
    %33 = vector.broadcast %28 : vector<1x384xf32> to vector<16x384xf32>
    %34 = arith.addf %33, %32 : vector<16x384xf32>
    %c2_12 = arith.constant 2 : index
    %c0_13 = arith.constant 0 : index
    %c0_14 = arith.constant 0 : index
    %35 = vector.load %arg2[%c2_12, %c0_13, %c0_14] : memref<4x16x384xf32, #tpu.memory_space<vmem>>, vector<1x16x384xf32>
    %36 = vector.shape_cast %35 : vector<1x16x384xf32> to vector<16x384xf32>
    %37 = vector.shape_cast %34 : vector<16x384xf32> to vector<1x16x384xf32>
    tpu.vector_store %arg2[%c2_12, %c0_13, %c0_14], %37 {strides = array<i32>} : memref<4x16x384xf32, #tpu.memory_space<vmem>>, vector<1x16x384xf32>,
    %c3 = arith.constant 3 : index
    %c0_15 = arith.constant 0 : index
    %c0_16 = arith.constant 0 : index
    %38 = vector.load %arg1[%c3, %c0_15, %c0_16] : memref<4x2x384xf32, #tpu.memory_space<vmem>>, vector<1x2x384xf32>
    %39 = vector.shape_cast %38 : vector<1x2x384xf32> to vector<2x384xf32>
    %40 = vector.extract_strided_slice %39 {offsets = [0, 0], sizes = [1, 384], strides = [1, 1]} : vector<2x384xf32> to vector<1x384xf32>
    %41 = vector.extract_strided_slice %39 {offsets = [1, 0], sizes = [1, 384], strides = [1, 1]} : vector<2x384xf32> to vector<1x384xf32>
    %42 = vector.broadcast %1 : vector<16x1xf32> to vector<16x384xf32>
    %43 = vector.broadcast %41 : vector<1x384xf32> to vector<16x384xf32>
    %44 = arith.mulf %42, %43 : vector<16x384xf32>
    %45 = vector.broadcast %40 : vector<1x384xf32> to vector<16x384xf32>
    %46 = arith.addf %45, %44 : vector<16x384xf32>
    %c3_17 = arith.constant 3 : index
    %c0_18 = arith.constant 0 : index
    %c0_19 = arith.constant 0 : index
    %47 = vector.load %arg2[%c3_17, %c0_18, %c0_19] : memref<4x16x384xf32, #tpu.memory_space<vmem>>, vector<1x16x384xf32>
    %48 = vector.shape_cast %47 : vector<1x16x384xf32> to vector<16x384xf32>
    %49 = vector.shape_cast %46 : vector<16x384xf32> to vector<1x16x384xf32>
    tpu.vector_store %arg2[%c3_17, %c0_18, %c0_19], %49 {strides = array<i32>} : memref<4x16x384xf32, #tpu.memory_space<vmem>>, vector<1x16x384xf32>,
    return
  }
  func.func @transform_0(%arg0: i32) -> (i32, i32, i32) {
    %c0_i32 = arith.constant 0 : i32
    %c0_i32_0 = arith.constant 0 : i32
    %c0_i32_1 = arith.constant 0 : i32
    %c0_i32_2 = arith.constant 0 : i32
    return %c0_i32, %c0_i32_0, %c0_i32_1 : i32, i32, i32
  }
  func.func @transform_1(%arg0: i32) -> (i32, i32, i32) {
    %c0_i32 = arith.constant 0 : i32
    %c0_i32_0 = arith.constant 0 : i32
    %c0_i32_1 = arith.constant 0 : i32
    %c0_i32_2 = arith.constant 0 : i32
    return %c0_i32, %c0_i32_0, %c0_i32_1 : i32, i32, i32
  }
}

</mosaic_0001>

<llo_original>
// kernel: tpu_custom_call.1
$region0: #{tpu_custom_call.1}
  #allocation0 [shape = 'u32[]', space=smem, size = 0x4, offset = 0x4, fixed_abs, tag = 'smem constant byte address 0x4 - core index']
  #allocation1 [shape = 'u32[72,128]{1,0:T(1,128)}', space=vmem, size = 0x9000, scoped, tag = 'internal scratch']
  %s0 = inlined_call_operand.hbm [shape: f32[4,2,384], index: 0, kind: input, shape index: {}]
  %s1 = inlined_call_operand.hbm [shape: f32[4,16,384], index: 1, kind: output, shape index: {}]
  %s2 = sld [smem:[#allocation0]]
  $region18: #{tpu_custom_call.1} parent=0
    _
  %s4 = ssub.s32 1, %s2
  %s5 = scalar_select 0, %s4, %s2
  $region1: #{tpu_custom_call.1} parent=0
    #allocation2 [shape = 'u8[12288]{0}', space=vmem, size = 0x3000, scoped, tag = 'input window, operand 0, single buffered']
    #allocation3 [shape = 's32[1]{0}', space=sflag, size = 0x4, scoped, tag = 'scoped memory for tpu_custom_call.1']
    #allocation4 [shape = 's32[1]{0}', space=sflag, size = 0x4, scoped, tag = 'scoped memory for tpu_custom_call.1']
    #allocation5 [shape = 'u8[98304]{0}', space=vmem, size = 0x18000, scoped, tag = 'output window, operand 0, single buffered']
    %6 = vsyncpa [#allocation3], 0
    %7 = vsyncpa [#allocation4], 0
    // Predicated region
    $region2: #{tpu_custom_call.1} parent=1 // pred_check
      _
    $region3: #{tpu_custom_call.1} parent=1 // pred_check_branch
      %9 = sbr.rel (0) target = $region5
    $region4: #{tpu_custom_call.1} parent=1 // pred_region
      %11 = vsyncadd [#allocation3], 0
      %s12 = sshll.u32 %s0, 4
      %s13 = int_to_ptr.hbm [resolvable:$true] %s12
      %s14 = sshll.u32 [#allocation2], 4
      %s15 = int_to_ptr.vmem [resolvable:$true] %s14
      %20 = dma.hbm_to_vmem [thread:$0]  %s13, 384, %s15, [#allocation3], 96, 96, 6
    $region5: #{tpu_custom_call.1} parent=1 // pred_fallthru
      _
    // Predicated region
    $region6: #{tpu_custom_call.1} parent=1 // pred_check
      _
    $region7: #{tpu_custom_call.1} parent=1 // pred_check_branch
      %22 = sbr.rel (0) target = $region9
    $region8: #{tpu_custom_call.1} parent=1 // pred_region
      %24 = dma.done [#allocation3], 384
    $region9: #{tpu_custom_call.1} parent=1 // pred_fallthru
      _
    %v25 = vlaneseq
    %v26 = vshrl.u32 %v25, 7
    %v27 = vadd.s32 %v26, 8
    %v28 = vcvt.s32.f32 %v26
    %v29 = vcvt.s32.f32 %v27
    %v30 = vld [vmem:[#allocation2] sm:$0x3f]
    %v32 = vperm.slane %v30, 1
    %v33 = vperm.slane %v30, 3
    %v34 = vperm.slane %v30, 5
    %v38 = vperm.slane %v32, 1
    %v39 = vperm.slane %v33, 1
    %v40 = vperm.slane %v34, 1
    %v41 = vmul.f32 %v28, %v38
    %v42 = vmul.f32 %v28, %v39
    %v43 = vmul.f32 %v28, %v40
    %v44 = vmul.f32 %v29, %v38
    %v45 = vmul.f32 %v29, %v39
    %v46 = vmul.f32 %v29, %v40
    %v47 = vperm.slane %v30, 0
    %v48 = vperm.slane %v30, 2
    %v49 = vperm.slane %v30, 4
    %v53 = vperm.slane %v47, 0
    %v54 = vperm.slane %v48, 0
    %v55 = vperm.slane %v49, 0
    %v56 = vadd.f32 %v53, %v41
    %v57 = vadd.f32 %v54, %v42
    %v58 = vadd.f32 %v55, %v43
    %v59 = vadd.f32 %v53, %v44
    %v60 = vadd.f32 %v54, %v45
    %v61 = vadd.f32 %v55, %v46
    %62 = vst [vmem:[#allocation5] sm:$0xff] %v56
    %63 = vst [vmem:[#allocation5 + $0x8] sm:$0xff] %v57
    %64 = vst [vmem:[#allocation5 + $0x10] sm:$0xff] %v58
    %65 = vst [vmem:[#allocation5 + $0x18] sm:$0xff] %v59
    %66 = vst [vmem:[#allocation5 + $0x20] sm:$0xff] %v60
    %67 = vst [vmem:[#allocation5 + $0x28] sm:$0xff] %v61
    %s68 = scalar_lea.vmem [#allocation2], 6
    %v69 = vld [vmem:[%s68] sm:$0x3f]
    %v71 = vperm.slane %v69, 1
    %v72 = vperm.slane %v69, 3
    %v73 = vperm.slane %v69, 5
    %v77 = vperm.slane %v71, 1
    %v78 = vperm.slane %v72, 1
    %v79 = vperm.slane %v73, 1
    %v80 = vmul.f32 %v28, %v77
    %v81 = vmul.f32 %v28, %v78
    %v82 = vmul.f32 %v28, %v79
    %v83 = vmul.f32 %v29, %v77
    %v84 = vmul.f32 %v29, %v78
    %v85 = vmul.f32 %v29, %v79
    %v86 = vperm.slane %v69, 0
    %v87 = vperm.slane %v69, 2
    %v88 = vperm.slane %v69, 4
    %v92 = vperm.slane %v86, 0
    %v93 = vperm.slane %v87, 0
    %v94 = vperm.slane %v88, 0
    %v95 = vadd.f32 %v92, %v80
    %v96 = vadd.f32 %v93, %v81
    %v97 = vadd.f32 %v94, %v82
    %v98 = vadd.f32 %v92, %v83
    %v99 = vadd.f32 %v93, %v84
    %v100 = vadd.f32 %v94, %v85
    %s101 = scalar_lea.vmem [#allocation5], 48
    %102 = vst [vmem:[%s101] sm:$0xff] %v95
    %103 = vst [vmem:[%s101 + $0x8] sm:$0xff] %v96
    %104 = vst [vmem:[%s101 + $0x10] sm:$0xff] %v97
    %105 = vst [vmem:[%s101 + $0x18] sm:$0xff] %v98
    %106 = vst [vmem:[%s101 + $0x20] sm:$0xff] %v99
    %107 = vst [vmem:[%s101 + $0x28] sm:$0xff] %v100
    %s108 = scalar_lea.vmem [#allocation2], 12
    %v109 = vld [vmem:[%s108] sm:$0x3f]
    %v111 = vperm.slane %v109, 1
    %v112 = vperm.slane %v109, 3
    %v113 = vperm.slane %v109, 5
    %v117 = vperm.slane %v111, 1
    %v118 = vperm.slane %v112, 1
    %v119 = vperm.slane %v113, 1
    %v120 = vmul.f32 %v28, %v117
    %v121 = vmul.f32 %v28, %v118
    %v122 = vmul.f32 %v28, %v119
    %v123 = vmul.f32 %v29, %v117
    %v124 = vmul.f32 %v29, %v118
    %v125 = vmul.f32 %v29, %v119
    %v126 = vperm.slane %v109, 0
    %v127 = vperm.slane %v109, 2
    %v128 = vperm.slane %v109, 4
    %v132 = vperm.slane %v126, 0
    %v133 = vperm.slane %v127, 0
    %v134 = vperm.slane %v128, 0
    %v135 = vadd.f32 %v132, %v120
    %v136 = vadd.f32 %v133, %v121
    %v137 = vadd.f32 %v134, %v122
    %v138 = vadd.f32 %v132, %v123
    %v139 = vadd.f32 %v133, %v124
    %v140 = vadd.f32 %v134, %v125
    %s141 = scalar_lea.vmem [#allocation5], 96
    %142 = vst [vmem:[%s141] sm:$0xff] %v135
    %143 = vst [vmem:[%s141 + $0x8] sm:$0xff] %v136
    %144 = vst [vmem:[%s141 + $0x10] sm:$0xff] %v137
    %145 = vst [vmem:[%s141 + $0x18] sm:$0xff] %v138
    %146 = vst [vmem:[%s141 + $0x20] sm:$0xff] %v139
    %147 = vst [vmem:[%s141 + $0x28] sm:$0xff] %v140
    %s148 = scalar_lea.vmem [#allocation2], 18
    %v149 = vld [vmem:[%s148] sm:$0x3f]
    %v151 = vperm.slane %v149, 1
    %v152 = vperm.slane %v149, 3
    %v153 = vperm.slane %v149, 5
    %v157 = vperm.slane %v151, 1
    %v158 = vperm.slane %v152, 1
    %v159 = vperm.slane %v153, 1
    %v160 = vmul.f32 %v28, %v157
    %v161 = vmul.f32 %v28, %v158
    %v162 = vmul.f32 %v28, %v159
    %v163 = vmul.f32 %v29, %v157
    %v164 = vmul.f32 %v29, %v158
    %v165 = vmul.f32 %v29, %v159
    %v166 = vperm.slane %v149, 0
    %v167 = vperm.slane %v149, 2
    %v168 = vperm.slane %v149, 4
    %v172 = vperm.slane %v166, 0
    %v173 = vperm.slane %v167, 0
    %v174 = vperm.slane %v168, 0
    %v175 = vadd.f32 %v172, %v160
    %v176 = vadd.f32 %v173, %v161
    %v177 = vadd.f32 %v174, %v162
    %v178 = vadd.f32 %v172, %v163
    %v179 = vadd.f32 %v173, %v164
    %v180 = vadd.f32 %v174, %v165
    %s181 = scalar_lea.vmem [#allocation5], 144
    %182 = vst [vmem:[%s181] sm:$0xff] %v175
    %183 = vst [vmem:[%s181 + $0x8] sm:$0xff] %v176
    %184 = vst [vmem:[%s181 + $0x10] sm:$0xff] %v177
    %185 = vst [vmem:[%s181 + $0x18] sm:$0xff] %v178
    %186 = vst [vmem:[%s181 + $0x20] sm:$0xff] %v179
    %187 = vst [vmem:[%s181 + $0x28] sm:$0xff] %v180
    // Predicated region
    $region10: #{tpu_custom_call.1} parent=1 // pred_check
      _
    $region11: #{tpu_custom_call.1} parent=1 // pred_check_branch
      %189 = sbr.rel (0) target = $region13
    $region12: #{tpu_custom_call.1} parent=1 // pred_region
      %191 = vsyncadd [#allocation4], 0
      %s192 = sshll.u32 [#allocation5], 4
      %s193 = int_to_ptr.vmem [resolvable:$true] %s192
      %s194 = sshll.u32 %s1, 4
      %s195 = int_to_ptr.hbm [resolvable:$true] %s194
      %200 = dma.vmem_to_hbm [thread:$0]  %s193, 3072, %s195, [#allocation4], 384, 384, 24
    $region13: #{tpu_custom_call.1} parent=1 // pred_fallthru
      _
    // Predicated region
    $region14: #{tpu_custom_call.1} parent=1 // pred_check
      _
    $region15: #{tpu_custom_call.1} parent=1 // pred_check_branch
      %202 = sbr.rel (0) target = $region17
    $region16: #{tpu_custom_call.1} parent=1 // pred_region
      %204 = dma.done [#allocation4], 3072
    $region17: #{tpu_custom_call.1} parent=1 // pred_fallthru
      _
    %205 = vsyncpa [#allocation3], 1
    %206 = vsyncpa [#allocation4], 1

</llo_original>
